<compile_context>
chip_gen: v5e
topology: v5e:2x2
jax: 0.10.0
libtpu: 0.0.40
codegen_flags: <defaults>
</compile_context>

<pallas_src>
import functools
import itertools

import jax
import jax.numpy as jnp
import numpy as np
from jax.experimental import pallas as pl
from jax.experimental.pallas import tpu as pltpu


# ---------------------------------------------------------------------------
# Fused sin/cos: shared Cody–Waite range reduction + Cephes f32 polynomials.
# pi/2 = _PIO2_1 + _PIO2_2 + _PIO2_3; _PIO2_1/_PIO2_2 have few mantissa bits
# so k*_PIO2_{1,2} is exact for |k| up to ~2^11 — i.e. the reduction is good
# to |ip| of a few thousand radians, far beyond max_freq * D * |coord| here.
# ---------------------------------------------------------------------------
_TWO_OVER_PI = 0.6366197723675814
_PIO2_1 = 1.5703125
_PIO2_2 = 4.837512969970703125e-4
_PIO2_3 = 7.54978995489188216e-8


def _sincos(x):
    """Return (sin(x), cos(x)) for an f32 array with one shared reduction."""
    k = jnp.floor(x * _TWO_OVER_PI + 0.5)           # nearest multiple of pi/2
    r = x - k * _PIO2_1
    r = r - k * _PIO2_2
    r = r - k * _PIO2_3                              # r in [-pi/4, pi/4]
    z = r * r
    # Cephes single-precision minimax polynomials on [-pi/4, pi/4].
    sp = (-1.9515295891e-4 * z + 8.3321608736e-3) * z - 1.6666654611e-1
    sr = r + r * z * sp                              # sin(r)
    cp = (2.443315711809948e-5 * z - 1.388731625493765e-3) * z \
        + 4.166664568298827e-2
    cr = 1.0 - 0.5 * z + z * z * cp                  # cos(r)
    # Quadrant select: q = k mod 4 (bitwise-and handles negative k correctly).
    q = jnp.bitwise_and(k.astype(jnp.int32), 3)
    swap = jnp.bitwise_and(q, 1) == 1
    sin_v = jnp.where(swap, cr, sr)
    cos_v = jnp.where(swap, sr, cr)
    sin_v = jnp.where(q >= 2, -sin_v, sin_v)
    cos_v = jnp.where((q == 1) | (q == 2), -cos_v, cos_v)
    return sin_v, cos_v


def rtf_kernel(coord_ref, freq_ref, out_ref, *, D, rank_pad):
    """One tile: coords (TN, D), freq^T (D, rank_pad) -> out (TN, 2*rank_pad)."""
    c = coord_ref[...].astype(jnp.float32)           # (TN, D)
    f = freq_ref[...].astype(jnp.float32)            # (D, rank_pad)

    # inner products: sum_d c[:, d] * f[d, :]  -> (TN, rank_pad), lane-dense.
    ip = c[:, 0:1] * f[0:1, :]
    for d in range(1, D):
        ip = ip + c[:, d:d + 1] * f[d:d + 1, :]

    sin_v, cos_v = _sincos(ip)

    # cat([cos, sin], -1) via static, lane-aligned Ref slices (no concat op).
    out_ref[:, 0:rank_pad] = cos_v.astype(out_ref.dtype)
    out_ref[:, rank_pad:2 * rank_pad] = sin_v.astype(out_ref.dtype)


def _choose_tile_n(N, rank_pad, out_itemsize):
    """Row-tile size from a VMEM budget + v7x two-TensorCore step count."""
    # Live-VMEM per row: double-buffered output block, lane-padded (to 128)
    # double-buffered coords block, ~8 f32 sincos temporaries per rank lane.
    per_row = (2 * (2 * rank_pad) * out_itemsize
               + 2 * 128 * 4
               + 8 * rank_pad * 4)
    budget = 24 * 1024 * 1024
    tile_n = max(8, min(4096, (budget // per_row) // 8 * 8))
    # v7x: 2 TCs share the single "parallel" grid axis -> keep >=~4 steps for
    # problems big enough to care (but never shrink tiles below 1024 rows).
    if N > 2048:
        quarter = ((N + 3) // 4 + 7) // 8 * 8
        tile_n = min(tile_n, max(1024, quarter))
    tile_n = min(tile_n, ((N + 7) // 8) * 8)          # never exceed problem size
    return max(8, tile_n)


def random_tph_fourier(coords, frequency_matrix, *, tile_n=None,
                       out_dtype=jnp.float32):
    """coords: (..., D), frequency_matrix: (rank, D) -> (..., 2*rank).

    out_dtype=jnp.bfloat16 halves output HBM writeback (worth ~1.8x on
    bandwidth-poor v5e) but silently diverges from the torch module's f32
    numerics — the default float32 matches torch exactly.
    """
    rank, D = frequency_matrix.shape
    assert coords.shape[-1] == D, (coords.shape, D)
    lead = coords.shape[:-1]
    N = int(np.prod(lead)) if lead else 1
    flat = coords.reshape(N, D).astype(jnp.float32)

    # Pad rank up to a lane-aligned width; padded freq columns are zero so the
    # garbage columns (cos(0)=1 / sin(0)=0) are sliced off only when needed.
    rank_pad = ((rank + 127) // 128) * 128
    freq_t = jnp.pad(frequency_matrix.T.astype(jnp.float32),
                     ((0, 0), (0, rank_pad - rank)))

    out_itemsize = jnp.dtype(out_dtype).itemsize
    if tile_n is None:
        tile_n = _choose_tile_n(N, rank_pad, out_itemsize)
    else:
        tile_n = max(8, min((int(tile_n) // 8) * 8, ((N + 7) // 8) * 8))

    grid = (pl.cdiv(N, tile_n),)   # partial edge block: stores are masked.

    kernel = functools.partial(rtf_kernel, D=D, rank_pad=rank_pad)

    cost = pl.CostEstimate(
        flops=int(N) * rank_pad * (2 * D + 24),
        transcendentals=2 * int(N) * rank,
        bytes_accessed=int(N) * (D * 4 + 2 * rank_pad * out_itemsize)
        + D * rank_pad * 4,
    )

    out = pl.pallas_call(
        kernel,
        out_shape=jax.ShapeDtypeStruct((N, 2 * rank_pad), out_dtype),
        grid=grid,
        in_specs=[
            pl.BlockSpec((tile_n, D), lambda i: (i, 0)),      # point rows
            pl.BlockSpec((D, rank_pad), lambda i: (0, 0)),    # freq^T (small)
        ],
        out_specs=pl.BlockSpec((tile_n, 2 * rank_pad), lambda i: (i, 0)),
        compiler_params=pltpu.CompilerParams(
            dimension_semantics=("parallel",),
            # 48 MiB: above v5e's 16 MiB default scoped limit (128 MiB phys),
            # comfortably below v7x's 64 MiB physical VMEM.
            vmem_limit_bytes=48 * 1024 * 1024),
        cost_estimate=cost,
    )(flat, freq_t)

    if rank_pad == rank:
        # Common case: kernel output IS the final layout — zero extra passes.
        return out.reshape(*lead, 2 * rank)
    # Unaligned rank: one depad pass.  Consumers that tolerate the padded
    # (cos | pad | sin | pad) layout should take the kernel output directly.
    out = jnp.concatenate(
        [out[:, :rank], out[:, rank_pad:rank_pad + rank]], axis=-1)
    return out.reshape(*lead, 2 * rank)


def random_tph_fourier_reference(coords, frequency_matrix):
    """Pure-JAX reference matching torch: cat([cos(c @ F.T), sin(c @ F.T)], -1)."""
    c = coords.astype(jnp.float32)
    f = frequency_matrix.astype(jnp.float32)
    ip = jnp.sum(c[..., None, :] * f, axis=-1)          # (..., rank)
    return jnp.concatenate([jnp.cos(ip), jnp.sin(ip)], axis=-1)


if __name__ == "__main__":
    key = jax.random.PRNGKey(0)
    k_coord, k_perm = jax.random.split(key)

    D, max_freq, rank = 2, 20, 128          # rank < max_freq**D -> random subset
    batch, num_points = 2, 64

    # freq_set = itertools.product(1..max_freq, repeat=D); deterministic
    # "random.sample(freq_set, rank)" via a JAX permutation of row indices.
    freq_set = np.array(
        [list(t) for t in itertools.product(range(1, max_freq + 1), repeat=D)],
        dtype=np.float32)                                   # (400, 2)
    sel = jax.random.permutation(k_perm, freq_set.shape[0])[:rank]
    frequency_matrix = jnp.asarray(freq_set)[sel]           # (rank, D)

    coords = jax.random.uniform(k_coord, (batch, num_points, D),
                                dtype=jnp.float32)

    out = random_tph_fourier(coords, frequency_matrix)
    out = jax.block_until_ready(out)

    ref = random_tph_fourier_reference(coords, frequency_matrix)
    assert out.shape == (batch, num_points, 2 * rank), out.shape
    np.testing.assert_allclose(np.asarray(out), np.asarray(ref),
                               rtol=2e-4, atol=2e-5)
    print("KERNEL_OK")
</pallas_src>

<mosaic_0001>
module attributes {stable_mosaic.version = 11 : i64} {
  func.func @rtf_kernel(%arg0: i32, %arg1: memref<128x2xf32, #tpu.memory_space<vmem>>, %arg2: memref<2x128xf32, #tpu.memory_space<vmem>>, %arg3: memref<128x256xf32, #tpu.memory_space<vmem>>) attributes {dimension_semantics = [#tpu.dimension_semantics<parallel>], iteration_bounds = array<i64: 1>, scalar_prefetch = 0 : i64, scratch_operands = 0 : i64, tpu.core_type = #tpu.core_type<tc>, window_params = [{transform_indices = @transform_0, window_bounds = array<i64: 128, 2>}, {pipeline_mode = #tpu.pipeline_mode<synchronous>, transform_indices = @transform_1, window_bounds = array<i64: 2, 128>}, {transform_indices = @transform_2, window_bounds = array<i64: 128, 256>}]} {
    %c0 = arith.constant 0 : index
    %c0_0 = arith.constant 0 : index
    %0 = vector.load %arg1[%c0, %c0_0] : memref<128x2xf32, #tpu.memory_space<vmem>>, vector<128x2xf32>
    %c0_1 = arith.constant 0 : index
    %c0_2 = arith.constant 0 : index
    %1 = vector.load %arg2[%c0_1, %c0_2] : memref<2x128xf32, #tpu.memory_space<vmem>>, vector<2x128xf32>
    %2 = vector.extract_strided_slice %0 {offsets = [0, 0], sizes = [128, 1], strides = [1, 1]} : vector<128x2xf32> to vector<128x1xf32>
    %3 = vector.extract_strided_slice %1 {offsets = [0, 0], sizes = [1, 128], strides = [1, 1]} : vector<2x128xf32> to vector<1x128xf32>
    %4 = vector.broadcast %2 : vector<128x1xf32> to vector<128x128xf32>
    %5 = vector.broadcast %3 : vector<1x128xf32> to vector<128x128xf32>
    %6 = arith.mulf %4, %5 : vector<128x128xf32>
    %7 = vector.extract_strided_slice %0 {offsets = [0, 1], sizes = [128, 1], strides = [1, 1]} : vector<128x2xf32> to vector<128x1xf32>
    %8 = vector.extract_strided_slice %1 {offsets = [1, 0], sizes = [1, 128], strides = [1, 1]} : vector<2x128xf32> to vector<1x128xf32>
    %9 = vector.broadcast %7 : vector<128x1xf32> to vector<128x128xf32>
    %10 = vector.broadcast %8 : vector<1x128xf32> to vector<128x128xf32>
    %11 = arith.mulf %9, %10 : vector<128x128xf32>
    %12 = arith.addf %6, %11 : vector<128x128xf32>
    %cst = arith.constant 0.636619746 : f32
    %13 = vector.broadcast %cst : f32 to vector<128x128xf32>
    %14 = arith.mulf %12, %13 : vector<128x128xf32>
    %cst_3 = arith.constant 5.000000e-01 : f32
    %15 = vector.broadcast %cst_3 : f32 to vector<128x128xf32>
    %16 = arith.addf %14, %15 : vector<128x128xf32>
    %17 = math.floor %16 : vector<128x128xf32>
    %cst_4 = arith.constant 1.5703125 : f32
    %18 = vector.broadcast %cst_4 : f32 to vector<128x128xf32>
    %19 = arith.mulf %17, %18 : vector<128x128xf32>
    %20 = arith.subf %12, %19 : vector<128x128xf32>
    %cst_5 = arith.constant 4.83751297E-4 : f32
    %21 = vector.broadcast %cst_5 : f32 to vector<128x128xf32>
    %22 = arith.mulf %17, %21 : vector<128x128xf32>
    %23 = arith.subf %20, %22 : vector<128x128xf32>
    %cst_6 = arith.constant 7.549790e-08 : f32
    %24 = vector.broadcast %cst_6 : f32 to vector<128x128xf32>
    %25 = arith.mulf %17, %24 : vector<128x128xf32>
    %26 = arith.subf %23, %25 : vector<128x128xf32>
    %27 = arith.mulf %26, %26 : vector<128x128xf32>
    %cst_7 = arith.constant -1.95152956E-4 : f32
    %28 = vector.broadcast %cst_7 : f32 to vector<128x128xf32>
    %29 = arith.mulf %28, %27 : vector<128x128xf32>
    %cst_8 = arith.constant 0.00833216123 : f32
    %30 = vector.broadcast %cst_8 : f32 to vector<128x128xf32>
    %31 = arith.addf %29, %30 : vector<128x128xf32>
    %32 = arith.mulf %31, %27 : vector<128x128xf32>
    %cst_9 = arith.constant 0.166666552 : f32
    %33 = vector.broadcast %cst_9 : f32 to vector<128x128xf32>
    %34 = arith.subf %32, %33 : vector<128x128xf32>
    %35 = arith.mulf %26, %27 : vector<128x128xf32>
    %36 = arith.mulf %35, %34 : vector<128x128xf32>
    %37 = arith.addf %26, %36 : vector<128x128xf32>
    %cst_10 = arith.constant 2.44331568E-5 : f32
    %38 = vector.broadcast %cst_10 : f32 to vector<128x128xf32>
    %39 = arith.mulf %38, %27 : vector<128x128xf32>
    %cst_11 = arith.constant 0.00138873165 : f32
    %40 = vector.broadcast %cst_11 : f32 to vector<128x128xf32>
    %41 = arith.subf %39, %40 : vector<128x128xf32>
    %42 = arith.mulf %41, %27 : vector<128x128xf32>
    %cst_12 = arith.constant 0.0416666456 : f32
    %43 = vector.broadcast %cst_12 : f32 to vector<128x128xf32>
    %44 = arith.addf %42, %43 : vector<128x128xf32>
    %cst_13 = arith.constant 5.000000e-01 : f32
    %45 = vector.broadcast %cst_13 : f32 to vector<128x128xf32>
    %46 = arith.mulf %45, %27 : vector<128x128xf32>
    %cst_14 = arith.constant 1.000000e+00 : f32
    %47 = vector.broadcast %cst_14 : f32 to vector<128x128xf32>
    %48 = arith.subf %47, %46 : vector<128x128xf32>
    %49 = arith.mulf %27, %27 : vector<128x128xf32>
    %50 = arith.mulf %49, %44 : vector<128x128xf32>
    %51 = arith.addf %48, %50 : vector<128x128xf32>
    %52 = arith.fptosi %17 : vector<128x128xf32> to vector<128x128xi32>
    %c3_i32 = arith.constant 3 : i32
    %53 = vector.broadcast %c3_i32 : i32 to vector<128x128xi32>
    %54 = arith.andi %52, %53 : vector<128x128xi32>
    %c1_i32 = arith.constant 1 : i32
    %55 = vector.broadcast %c1_i32 : i32 to vector<128x128xi32>
    %56 = arith.andi %54, %55 : vector<128x128xi32>
    %c1_i32_15 = arith.constant 1 : i32
    %57 = vector.broadcast %c1_i32_15 : i32 to vector<128x128xi32>
    %58 = arith.cmpi eq, %56, %57 : vector<128x128xi32>
    %59 = arith.select %58, %51, %37 : vector<128x128xi1>, vector<128x128xf32>
    %60 = arith.select %58, %37, %51 : vector<128x128xi1>, vector<128x128xf32>
    %c2_i32 = arith.constant 2 : i32
    %61 = vector.broadcast %c2_i32 : i32 to vector<128x128xi32>
    %62 = arith.cmpi sge, %54, %61 : vector<128x128xi32>
    %cst_16 = arith.constant 0.000000e+00 : f32
    %63 = vector.broadcast %cst_16 : f32 to vector<128x128xf32>
    %64 = arith.subf %63, %59 : vector<128x128xf32>
    %65 = arith.select %62, %64, %59 : vector<128x128xi1>, vector<128x128xf32>
    %c1_i32_17 = arith.constant 1 : i32
    %66 = vector.broadcast %c1_i32_17 : i32 to vector<128x128xi32>
    %67 = arith.cmpi eq, %54, %66 : vector<128x128xi32>
    %c2_i32_18 = arith.constant 2 : i32
    %68 = vector.broadcast %c2_i32_18 : i32 to vector<128x128xi32>
    %69 = arith.cmpi eq, %54, %68 : vector<128x128xi32>
    %70 = arith.ori %67, %69 : vector<128x128xi1>
    %cst_19 = arith.constant 0.000000e+00 : f32
    %71 = vector.broadcast %cst_19 : f32 to vector<128x128xf32>
    %72 = arith.subf %71, %60 : vector<128x128xf32>
    %73 = arith.select %70, %72, %60 : vector<128x128xi1>, vector<128x128xf32>
    %c0_20 = arith.constant 0 : index
    %c0_21 = arith.constant 0 : index
    %74 = vector.load %arg3[%c0_20, %c0_21] : memref<128x256xf32, #tpu.memory_space<vmem>>, vector<128x128xf32>
    tpu.vector_store %arg3[%c0_20, %c0_21], %73 {strides = array<i32>} : memref<128x256xf32, #tpu.memory_space<vmem>>, vector<128x128xf32>,
    %c0_22 = arith.constant 0 : index
    %c128 = arith.constant 128 : index
    %75 = vector.load %arg3[%c0_22, %c128] : memref<128x256xf32, #tpu.memory_space<vmem>>, vector<128x128xf32>
    tpu.vector_store %arg3[%c0_22, %c128], %65 {strides = array<i32>} : memref<128x256xf32, #tpu.memory_space<vmem>>, vector<128x128xf32>,
    return
  }
  func.func @transform_0(%arg0: i32) -> (i32, i32) {
    %c0_i32 = arith.constant 0 : i32
    %c0_i32_0 = arith.constant 0 : i32
    return %arg0, %c0_i32 : i32, i32
  }
  func.func @transform_1(%arg0: i32) -> (i32, i32) {
    %c0_i32 = arith.constant 0 : i32
    %c0_i32_0 = arith.constant 0 : i32
    %c0_i32_1 = arith.constant 0 : i32
    return %c0_i32, %c0_i32_0 : i32, i32
  }
  func.func @transform_2(%arg0: i32) -> (i32, i32) {
    %c0_i32 = arith.constant 0 : i32
    %c0_i32_0 = arith.constant 0 : i32
    return %arg0, %c0_i32 : i32, i32
  }
}

</mosaic_0001>

<llo_original>
// kernel: tpu_custom_call.1
$region0: #{tpu_custom_call.1}
  #allocation0 [shape = 'u32[]', space=smem, size = 0x4, offset = 0x4, fixed_abs, tag = 'smem constant byte address 0x4 - core index']
  #allocation1 [shape = 'u32[72,128]{1,0:T(1,128)}', space=vmem, size = 0x9000, scoped, tag = 'internal scratch']
  %s0 = inlined_call_operand.vmem [shape: f32[128,2], index: 0, kind: input, shape index: {}]
  %s1 = inlined_call_operand.vmem [shape: f32[2,128], index: 1, kind: input, shape index: {}]
  %s2 = inlined_call_operand.hbm [shape: f32[128,256], index: 2, kind: output, shape index: {}]
  %s3 = sld [smem:[#allocation0]]
  $region18: #{tpu_custom_call.1} parent=0
    _
  %s5 = ssub.s32 1, %s3
  %s6 = scalar_select 0, %s5, %s3
  $region1: #{tpu_custom_call.1} parent=0
    #allocation2 [shape = 'u8[131072]{0}', space=vmem, size = 0x20000, scoped, tag = 'output window, operand 0, single buffered']
    #allocation3 [shape = 's32[1]{0}', space=sflag, size = 0x4, scoped, tag = 'scoped memory for tpu_custom_call.1']
    %7 = vsyncpa [#allocation3], 0
    // Predicated region
    $region2: #{tpu_custom_call.1} parent=1 // pred_check
      _
    $region3: #{tpu_custom_call.1} parent=1 // pred_check_branch
      %9 = sbr.rel (0) target = $region5
    $region4: #{tpu_custom_call.1} parent=1 // pred_region
      _
    $region5: #{tpu_custom_call.1} parent=1 // pred_fallthru
      _
    // Predicated region
    $region6: #{tpu_custom_call.1} parent=1 // pred_check
      _
    $region7: #{tpu_custom_call.1} parent=1 // pred_check_branch
      %11 = sbr.rel (0) target = $region9
    $region8: #{tpu_custom_call.1} parent=1 // pred_region
      _
    $region9: #{tpu_custom_call.1} parent=1 // pred_fallthru
      _
    %v12 = vld [vmem:[%s0] sm:$0xff]
    %v13 = vld [vmem:[%s0 + $0x8] sm:$0xff]
    %v14 = vld [vmem:[%s0 + $0x10] sm:$0xff]
    %v15 = vld [vmem:[%s0 + $0x18] sm:$0xff]
    %v16 = vld [vmem:[%s0 + $0x20] sm:$0xff]
    %v17 = vld [vmem:[%s0 + $0x28] sm:$0xff]
    %v18 = vld [vmem:[%s0 + $0x30] sm:$0xff]
    %v19 = vld [vmem:[%s0 + $0x38] sm:$0xff]
    %v20 = vld [vmem:[%s0 + $0x40] sm:$0xff]
    %v21 = vld [vmem:[%s0 + $0x48] sm:$0xff]
    %v22 = vld [vmem:[%s0 + $0x50] sm:$0xff]
    %v23 = vld [vmem:[%s0 + $0x58] sm:$0xff]
    %v24 = vld [vmem:[%s0 + $0x60] sm:$0xff]
    %v25 = vld [vmem:[%s0 + $0x68] sm:$0xff]
    %v26 = vld [vmem:[%s0 + $0x70] sm:$0xff]
    %v27 = vld [vmem:[%s0 + $0x78] sm:$0xff]
    %v28 = vld [vmem:[%s1] sm:$0x3]
    %30 = vset.pattern.permute.xlu0 0
    %31 = vperm.xlu0 %30, %v12
    %v32 = vpop.permute.xlu0 %31
    %35 = vset.pattern.permute.xlu0 0
    %36 = vperm.xlu0 %35, %v13
    %v37 = vpop.permute.xlu0 %36
    %40 = vset.pattern.permute.xlu0 0
    %41 = vperm.xlu0 %40, %v14
    %v42 = vpop.permute.xlu0 %41
    %45 = vset.pattern.permute.xlu0 0
    %46 = vperm.xlu0 %45, %v15
    %v47 = vpop.permute.xlu0 %46
    %50 = vset.pattern.permute.xlu0 0
    %51 = vperm.xlu0 %50, %v16
    %v52 = vpop.permute.xlu0 %51
    %55 = vset.pattern.permute.xlu0 0
    %56 = vperm.xlu0 %55, %v17
    %v57 = vpop.permute.xlu0 %56
    %60 = vset.pattern.permute.xlu0 0
    %61 = vperm.xlu0 %60, %v18
    %v62 = vpop.permute.xlu0 %61
    %65 = vset.pattern.permute.xlu0 0
    %66 = vperm.xlu0 %65, %v19
    %v67 = vpop.permute.xlu0 %66
    %70 = vset.pattern.permute.xlu0 0
    %71 = vperm.xlu0 %70, %v20
    %v72 = vpop.permute.xlu0 %71
    %75 = vset.pattern.permute.xlu0 0
    %76 = vperm.xlu0 %75, %v21
    %v77 = vpop.permute.xlu0 %76
    %80 = vset.pattern.permute.xlu0 0
    %81 = vperm.xlu0 %80, %v22
    %v82 = vpop.permute.xlu0 %81
    %85 = vset.pattern.permute.xlu0 0
    %86 = vperm.xlu0 %85, %v23
    %v87 = vpop.permute.xlu0 %86
    %90 = vset.pattern.permute.xlu0 0
    %91 = vperm.xlu0 %90, %v24
    %v92 = vpop.permute.xlu0 %91
    %95 = vset.pattern.permute.xlu0 0
    %96 = vperm.xlu0 %95, %v25
    %v97 = vpop.permute.xlu0 %96
    %100 = vset.pattern.permute.xlu0 0
    %101 = vperm.xlu0 %100, %v26
    %v102 = vpop.permute.xlu0 %101
    %105 = vset.pattern.permute.xlu0 0
    %106 = vperm.xlu0 %105, %v27
    %v107 = vpop.permute.xlu0 %106
    %v109 = vperm.slane %v28, 0
    %v110 = vmul.f32 %v32, %v109
    %v111 = vmul.f32 %v37, %v109
    %v112 = vmul.f32 %v42, %v109
    %v113 = vmul.f32 %v47, %v109
    %v114 = vmul.f32 %v52, %v109
    %v115 = vmul.f32 %v57, %v109
    %v116 = vmul.f32 %v62, %v109
    %v117 = vmul.f32 %v67, %v109
    %v118 = vmul.f32 %v72, %v109
    %v119 = vmul.f32 %v77, %v109
    %v120 = vmul.f32 %v82, %v109
    %v121 = vmul.f32 %v87, %v109
    %v122 = vmul.f32 %v92, %v109
    %v123 = vmul.f32 %v97, %v109
    %v124 = vmul.f32 %v102, %v109
    %v125 = vmul.f32 %v107, %v109
    %126 = vset.pattern.permute.xlu0 1
    %127 = vperm.xlu0 %126, %v12
    %v128 = vpop.permute.xlu0 %127
    %130 = vset.pattern.permute.xlu0 1
    %131 = vperm.xlu0 %130, %v13
    %v132 = vpop.permute.xlu0 %131
    %134 = vset.pattern.permute.xlu0 1
    %135 = vperm.xlu0 %134, %v14
    %v136 = vpop.permute.xlu0 %135
    %138 = vset.pattern.permute.xlu0 1
    %139 = vperm.xlu0 %138, %v15
    %v140 = vpop.permute.xlu0 %139
    %142 = vset.pattern.permute.xlu0 1
    %143 = vperm.xlu0 %142, %v16
    %v144 = vpop.permute.xlu0 %143
    %146 = vset.pattern.permute.xlu0 1
    %147 = vperm.xlu0 %146, %v17
    %v148 = vpop.permute.xlu0 %147
    %150 = vset.pattern.permute.xlu0 1
    %151 = vperm.xlu0 %150, %v18
    %v152 = vpop.permute.xlu0 %151
    %154 = vset.pattern.permute.xlu0 1
    %155 = vperm.xlu0 %154, %v19
    %v156 = vpop.permute.xlu0 %155
    %158 = vset.pattern.permute.xlu0 1
    %159 = vperm.xlu0 %158, %v20
    %v160 = vpop.permute.xlu0 %159
    %162 = vset.pattern.permute.xlu0 1
    %163 = vperm.xlu0 %162, %v21
    %v164 = vpop.permute.xlu0 %163
    %166 = vset.pattern.permute.xlu0 1
    %167 = vperm.xlu0 %166, %v22
    %v168 = vpop.permute.xlu0 %167
    %170 = vset.pattern.permute.xlu0 1
    %171 = vperm.xlu0 %170, %v23
    %v172 = vpop.permute.xlu0 %171
    %174 = vset.pattern.permute.xlu0 1
    %175 = vperm.xlu0 %174, %v24
    %v176 = vpop.permute.xlu0 %175
    %178 = vset.pattern.permute.xlu0 1
    %179 = vperm.xlu0 %178, %v25
    %v180 = vpop.permute.xlu0 %179
    %182 = vset.pattern.permute.xlu0 1
    %183 = vperm.xlu0 %182, %v26
    %v184 = vpop.permute.xlu0 %183
    %186 = vset.pattern.permute.xlu0 1
    %187 = vperm.xlu0 %186, %v27
    %v188 = vpop.permute.xlu0 %187
    %v190 = vperm.slane %v28, 1
    %v191 = vmul.f32 %v128, %v190
    %v192 = vmul.f32 %v132, %v190
    %v193 = vmul.f32 %v136, %v190
    %v194 = vmul.f32 %v140, %v190
    %v195 = vmul.f32 %v144, %v190
    %v196 = vmul.f32 %v148, %v190
    %v197 = vmul.f32 %v152, %v190
    %v198 = vmul.f32 %v156, %v190
    %v199 = vmul.f32 %v160, %v190
    %v200 = vmul.f32 %v164, %v190
    %v201 = vmul.f32 %v168, %v190
    %v202 = vmul.f32 %v172, %v190
    %v203 = vmul.f32 %v176, %v190
    %v204 = vmul.f32 %v180, %v190
    %v205 = vmul.f32 %v184, %v190
    %v206 = vmul.f32 %v188, %v190
    %v207 = vadd.f32 %v110, %v191
    %v208 = vadd.f32 %v111, %v192
    %v209 = vadd.f32 %v112, %v193
    %v210 = vadd.f32 %v113, %v194
    %v211 = vadd.f32 %v114, %v195
    %v212 = vadd.f32 %v115, %v196
    %v213 = vadd.f32 %v116, %v197
    %v214 = vadd.f32 %v117, %v198
    %v215 = vadd.f32 %v118, %v199
    %v216 = vadd.f32 %v119, %v200
    %v217 = vadd.f32 %v120, %v201
    %v218 = vadd.f32 %v121, %v202
    %v219 = vadd.f32 %v122, %v203
    %v220 = vadd.f32 %v123, %v204
    %v221 = vadd.f32 %v124, %v205
    %v222 = vadd.f32 %v125, %v206
    %v223 = vmul.f32 %v207, 0.63661975
    %v224 = vmul.f32 %v208, 0.63661975
    %v225 = vmul.f32 %v209, 0.63661975
    %v226 = vmul.f32 %v210, 0.63661975
    %v227 = vmul.f32 %v211, 0.63661975
    %v228 = vmul.f32 %v212, 0.63661975
    %v229 = vmul.f32 %v213, 0.63661975
    %v230 = vmul.f32 %v214, 0.63661975
    %v231 = vmul.f32 %v215, 0.63661975
    %v232 = vmul.f32 %v216, 0.63661975
    %v233 = vmul.f32 %v217, 0.63661975
    %v234 = vmul.f32 %v218, 0.63661975
    %v235 = vmul.f32 %v219, 0.63661975
    %v236 = vmul.f32 %v220, 0.63661975
    %v237 = vmul.f32 %v221, 0.63661975
    %v238 = vmul.f32 %v222, 0.63661975
    %v239 = vadd.f32 %v223, 0.5
    %v240 = vadd.f32 %v224, 0.5
    %v241 = vadd.f32 %v225, 0.5
    %v242 = vadd.f32 %v226, 0.5
    %v243 = vadd.f32 %v227, 0.5
    %v244 = vadd.f32 %v228, 0.5
    %v245 = vadd.f32 %v229, 0.5
    %v246 = vadd.f32 %v230, 0.5
    %v247 = vadd.f32 %v231, 0.5
    %v248 = vadd.f32 %v232, 0.5
    %v249 = vadd.f32 %v233, 0.5
    %v250 = vadd.f32 %v234, 0.5
    %v251 = vadd.f32 %v235, 0.5
    %v252 = vadd.f32 %v236, 0.5
    %v253 = vadd.f32 %v237, 0.5
    %v254 = vadd.f32 %v238, 0.5
    %v255 = vfloor.f32 %v239
    %v256 = vfloor.f32 %v240
    %v257 = vfloor.f32 %v241
    %v258 = vfloor.f32 %v242
    %v259 = vfloor.f32 %v243
    %v260 = vfloor.f32 %v244
    %v261 = vfloor.f32 %v245
    %v262 = vfloor.f32 %v246
    %v263 = vfloor.f32 %v247
    %v264 = vfloor.f32 %v248
    %v265 = vfloor.f32 %v249
    %v266 = vfloor.f32 %v250
    %v267 = vfloor.f32 %v251
    %v268 = vfloor.f32 %v252
    %v269 = vfloor.f32 %v253
    %v270 = vfloor.f32 %v254
    %v271 = vmul.f32 %v255, 1.5703125
    %v272 = vmul.f32 %v256, 1.5703125
    %v273 = vmul.f32 %v257, 1.5703125
    %v274 = vmul.f32 %v258, 1.5703125
    %v275 = vmul.f32 %v259, 1.5703125
    %v276 = vmul.f32 %v260, 1.5703125
    %v277 = vmul.f32 %v261, 1.5703125
    %v278 = vmul.f32 %v262, 1.5703125
    %v279 = vmul.f32 %v263, 1.5703125
    %v280 = vmul.f32 %v264, 1.5703125
    %v281 = vmul.f32 %v265, 1.5703125
    %v282 = vmul.f32 %v266, 1.5703125
    %v283 = vmul.f32 %v267, 1.5703125
    %v284 = vmul.f32 %v268, 1.5703125
    %v285 = vmul.f32 %v269, 1.5703125
    %v286 = vmul.f32 %v270, 1.5703125
    %v287 = vsub.f32 %v207, %v271
    %v288 = vsub.f32 %v208, %v272
    %v289 = vsub.f32 %v209, %v273
    %v290 = vsub.f32 %v210, %v274
    %v291 = vsub.f32 %v211, %v275
    %v292 = vsub.f32 %v212, %v276
    %v293 = vsub.f32 %v213, %v277
    %v294 = vsub.f32 %v214, %v278
    %v295 = vsub.f32 %v215, %v279
    %v296 = vsub.f32 %v216, %v280
    %v297 = vsub.f32 %v217, %v281
    %v298 = vsub.f32 %v218, %v282
    %v299 = vsub.f32 %v219, %v283
    %v300 = vsub.f32 %v220, %v284
    %v301 = vsub.f32 %v221, %v285
    %v302 = vsub.f32 %v222, %v286
    %v303 = vmul.f32 %v255, 0.0004837513
    %v304 = vmul.f32 %v256, 0.0004837513
    %v305 = vmul.f32 %v257, 0.0004837513
    %v306 = vmul.f32 %v258, 0.0004837513
    %v307 = vmul.f32 %v259, 0.0004837513
    %v308 = vmul.f32 %v260, 0.0004837513
    %v309 = vmul.f32 %v261, 0.0004837513
    %v310 = vmul.f32 %v262, 0.0004837513
    %v311 = vmul.f32 %v263, 0.0004837513
    %v312 = vmul.f32 %v264, 0.0004837513
    %v313 = vmul.f32 %v265, 0.0004837513
    %v314 = vmul.f32 %v266, 0.0004837513
    %v315 = vmul.f32 %v267, 0.0004837513
    %v316 = vmul.f32 %v268, 0.0004837513
    %v317 = vmul.f32 %v269, 0.0004837513
    %v318 = vmul.f32 %v270, 0.0004837513
    %v319 = vsub.f32 %v287, %v303
    %v320 = vsub.f32 %v288, %v304
    %v321 = vsub.f32 %v289, %v305
    %v322 = vsub.f32 %v290, %v306
    %v323 = vsub.f32 %v291, %v307
    %v324 = vsub.f32 %v292, %v308
    %v325 = vsub.f32 %v293, %v309
    %v326 = vsub.f32 %v294, %v310
    %v327 = vsub.f32 %v295, %v311
    %v328 = vsub.f32 %v296, %v312
    %v329 = vsub.f32 %v297, %v313
    %v330 = vsub.f32 %v298, %v314
    %v331 = vsub.f32 %v299, %v315
    %v332 = vsub.f32 %v300, %v316
    %v333 = vsub.f32 %v301, %v317
    %v334 = vsub.f32 %v302, %v318
    %v335 = vmul.f32 %v255, 7.54979e-08
    %v336 = vmul.f32 %v256, 7.54979e-08
    %v337 = vmul.f32 %v257, 7.54979e-08
    %v338 = vmul.f32 %v258, 7.54979e-08
    %v339 = vmul.f32 %v259, 7.54979e-08
    %v340 = vmul.f32 %v260, 7.54979e-08
    %v341 = vmul.f32 %v261, 7.54979e-08
    %v342 = vmul.f32 %v262, 7.54979e-08
    %v343 = vmul.f32 %v263, 7.54979e-08
    %v344 = vmul.f32 %v264, 7.54979e-08
    %v345 = vmul.f32 %v265, 7.54979e-08
    %v346 = vmul.f32 %v266, 7.54979e-08
    %v347 = vmul.f32 %v267, 7.54979e-08
    %v348 = vmul.f32 %v268, 7.54979e-08
    %v349 = vmul.f32 %v269, 7.54979e-08
    %v350 = vmul.f32 %v270, 7.54979e-08
    %v351 = vsub.f32 %v319, %v335
    %v352 = vsub.f32 %v320, %v336
    %v353 = vsub.f32 %v321, %v337
    %v354 = vsub.f32 %v322, %v338
    %v355 = vsub.f32 %v323, %v339
    %v356 = vsub.f32 %v324, %v340
    %v357 = vsub.f32 %v325, %v341
    %v358 = vsub.f32 %v326, %v342
    %v359 = vsub.f32 %v327, %v343
    %v360 = vsub.f32 %v328, %v344
    %v361 = vsub.f32 %v329, %v345
    %v362 = vsub.f32 %v330, %v346
    %v363 = vsub.f32 %v331, %v347
    %v364 = vsub.f32 %v332, %v348
    %v365 = vsub.f32 %v333, %v349
    %v366 = vsub.f32 %v334, %v350
    %v367 = vmul.f32 %v351, %v351
    %v368 = vmul.f32 %v352, %v352
    %v369 = vmul.f32 %v353, %v353
    %v370 = vmul.f32 %v354, %v354
    %v371 = vmul.f32 %v355, %v355
    %v372 = vmul.f32 %v356, %v356
    %v373 = vmul.f32 %v357, %v357
    %v374 = vmul.f32 %v358, %v358
    %v375 = vmul.f32 %v359, %v359
    %v376 = vmul.f32 %v360, %v360
    %v377 = vmul.f32 %v361, %v361
    %v378 = vmul.f32 %v362, %v362
    %v379 = vmul.f32 %v363, %v363
    %v380 = vmul.f32 %v364, %v364
    %v381 = vmul.f32 %v365, %v365
    %v382 = vmul.f32 %v366, %v366
    %v383 = vmul.f32 %v367, -0.00019515296
    %v384 = vmul.f32 %v368, -0.00019515296
    %v385 = vmul.f32 %v369, -0.00019515296
    %v386 = vmul.f32 %v370, -0.00019515296
    %v387 = vmul.f32 %v371, -0.00019515296
    %v388 = vmul.f32 %v372, -0.00019515296
    %v389 = vmul.f32 %v373, -0.00019515296
    %v390 = vmul.f32 %v374, -0.00019515296
    %v391 = vmul.f32 %v375, -0.00019515296
    %v392 = vmul.f32 %v376, -0.00019515296
    %v393 = vmul.f32 %v377, -0.00019515296
    %v394 = vmul.f32 %v378, -0.00019515296
    %v395 = vmul.f32 %v379, -0.00019515296
    %v396 = vmul.f32 %v380, -0.00019515296
    %v397 = vmul.f32 %v381, -0.00019515296
    %v398 = vmul.f32 %v382, -0.00019515296
    %v399 = vadd.f32 %v383, 0.008332161
    %v400 = vadd.f32 %v384, 0.008332161
    %v401 = vadd.f32 %v385, 0.008332161
    %v402 = vadd.f32 %v386, 0.008332161
    %v403 = vadd.f32 %v387, 0.008332161
    %v404 = vadd.f32 %v388, 0.008332161
    %v405 = vadd.f32 %v389, 0.008332161
    %v406 = vadd.f32 %v390, 0.008332161
    %v407 = vadd.f32 %v391, 0.008332161
    %v408 = vadd.f32 %v392, 0.008332161
    %v409 = vadd.f32 %v393, 0.008332161
    %v410 = vadd.f32 %v394, 0.008332161
    %v411 = vadd.f32 %v395, 0.008332161
    %v412 = vadd.f32 %v396, 0.008332161
    %v413 = vadd.f32 %v397, 0.008332161
    %v414 = vadd.f32 %v398, 0.008332161
    %v415 = vmul.f32 %v399, %v367
    %v416 = vmul.f32 %v400, %v368
    %v417 = vmul.f32 %v401, %v369
    %v418 = vmul.f32 %v402, %v370
    %v419 = vmul.f32 %v403, %v371
    %v420 = vmul.f32 %v404, %v372
    %v421 = vmul.f32 %v405, %v373
    %v422 = vmul.f32 %v406, %v374
    %v423 = vmul.f32 %v407, %v375
    %v424 = vmul.f32 %v408, %v376
    %v425 = vmul.f32 %v409, %v377
    %v426 = vmul.f32 %v410, %v378
    %v427 = vmul.f32 %v411, %v379
    %v428 = vmul.f32 %v412, %v380
    %v429 = vmul.f32 %v413, %v381
    %v430 = vmul.f32 %v414, %v382
    %v431 = vsub.f32 %v415, 0.16666655
    %v432 = vsub.f32 %v416, 0.16666655
    %v433 = vsub.f32 %v417, 0.16666655
    %v434 = vsub.f32 %v418, 0.16666655
    %v435 = vsub.f32 %v419, 0.16666655
    %v436 = vsub.f32 %v420, 0.16666655
    %v437 = vsub.f32 %v421, 0.16666655
    %v438 = vsub.f32 %v422, 0.16666655
    %v439 = vsub.f32 %v423, 0.16666655
    %v440 = vsub.f32 %v424, 0.16666655
    %v441 = vsub.f32 %v425, 0.16666655
    %v442 = vsub.f32 %v426, 0.16666655
    %v443 = vsub.f32 %v427, 0.16666655
    %v444 = vsub.f32 %v428, 0.16666655
    %v445 = vsub.f32 %v429, 0.16666655
    %v446 = vsub.f32 %v430, 0.16666655
    %v447 = vmul.f32 %v351, %v367
    %v448 = vmul.f32 %v352, %v368
    %v449 = vmul.f32 %v353, %v369
    %v450 = vmul.f32 %v354, %v370
    %v451 = vmul.f32 %v355, %v371
    %v452 = vmul.f32 %v356, %v372
    %v453 = vmul.f32 %v357, %v373
    %v454 = vmul.f32 %v358, %v374
    %v455 = vmul.f32 %v359, %v375
    %v456 = vmul.f32 %v360, %v376
    %v457 = vmul.f32 %v361, %v377
    %v458 = vmul.f32 %v362, %v378
    %v459 = vmul.f32 %v363, %v379
    %v460 = vmul.f32 %v364, %v380
    %v461 = vmul.f32 %v365, %v381
    %v462 = vmul.f32 %v366, %v382
    %v463 = vmul.f32 %v447, %v431
    %v464 = vmul.f32 %v448, %v432
    %v465 = vmul.f32 %v449, %v433
    %v466 = vmul.f32 %v450, %v434
    %v467 = vmul.f32 %v451, %v435
    %v468 = vmul.f32 %v452, %v436
    %v469 = vmul.f32 %v453, %v437
    %v470 = vmul.f32 %v454, %v438
    %v471 = vmul.f32 %v455, %v439
    %v472 = vmul.f32 %v456, %v440
    %v473 = vmul.f32 %v457, %v441
    %v474 = vmul.f32 %v458, %v442
    %v475 = vmul.f32 %v459, %v443
    %v476 = vmul.f32 %v460, %v444
    %v477 = vmul.f32 %v461, %v445
    %v478 = vmul.f32 %v462, %v446
    %v479 = vadd.f32 %v351, %v463
    %v480 = vadd.f32 %v352, %v464
    %v481 = vadd.f32 %v353, %v465
    %v482 = vadd.f32 %v354, %v466
    %v483 = vadd.f32 %v355, %v467
    %v484 = vadd.f32 %v356, %v468
    %v485 = vadd.f32 %v357, %v469
    %v486 = vadd.f32 %v358, %v470
    %v487 = vadd.f32 %v359, %v471
    %v488 = vadd.f32 %v360, %v472
    %v489 = vadd.f32 %v361, %v473
    %v490 = vadd.f32 %v362, %v474
    %v491 = vadd.f32 %v363, %v475
    %v492 = vadd.f32 %v364, %v476
    %v493 = vadd.f32 %v365, %v477
    %v494 = vadd.f32 %v366, %v478
    %v495 = vmul.f32 %v367, 2.4433157e-05
    %v496 = vmul.f32 %v368, 2.4433157e-05
    %v497 = vmul.f32 %v369, 2.4433157e-05
    %v498 = vmul.f32 %v370, 2.4433157e-05
    %v499 = vmul.f32 %v371, 2.4433157e-05
    %v500 = vmul.f32 %v372, 2.4433157e-05
    %v501 = vmul.f32 %v373, 2.4433157e-05
    %v502 = vmul.f32 %v374, 2.4433157e-05
    %v503 = vmul.f32 %v375, 2.4433157e-05
    %v504 = vmul.f32 %v376, 2.4433157e-05
    %v505 = vmul.f32 %v377, 2.4433157e-05
    %v506 = vmul.f32 %v378, 2.4433157e-05
    %v507 = vmul.f32 %v379, 2.4433157e-05
    %v508 = vmul.f32 %v380, 2.4433157e-05
    %v509 = vmul.f32 %v381, 2.4433157e-05
    %v510 = vmul.f32 %v382, 2.4433157e-05
    %v511 = vsub.f32 %v495, 0.0013887316
    %v512 = vsub.f32 %v496, 0.0013887316
    %v513 = vsub.f32 %v497, 0.0013887316
    %v514 = vsub.f32 %v498, 0.0013887316
    %v515 = vsub.f32 %v499, 0.0013887316
    %v516 = vsub.f32 %v500, 0.0013887316
    %v517 = vsub.f32 %v501, 0.0013887316
    %v518 = vsub.f32 %v502, 0.0013887316
    %v519 = vsub.f32 %v503, 0.0013887316
    %v520 = vsub.f32 %v504, 0.0013887316
    %v521 = vsub.f32 %v505, 0.0013887316
    %v522 = vsub.f32 %v506, 0.0013887316
    %v523 = vsub.f32 %v507, 0.0013887316
    %v524 = vsub.f32 %v508, 0.0013887316
    %v525 = vsub.f32 %v509, 0.0013887316
    %v526 = vsub.f32 %v510, 0.0013887316
    %v527 = vmul.f32 %v511, %v367
    %v528 = vmul.f32 %v512, %v368
    %v529 = vmul.f32 %v513, %v369
    %v530 = vmul.f32 %v514, %v370
    %v531 = vmul.f32 %v515, %v371
    %v532 = vmul.f32 %v516, %v372
    %v533 = vmul.f32 %v517, %v373
    %v534 = vmul.f32 %v518, %v374
    %v535 = vmul.f32 %v519, %v375
    %v536 = vmul.f32 %v520, %v376
    %v537 = vmul.f32 %v521, %v377
    %v538 = vmul.f32 %v522, %v378
    %v539 = vmul.f32 %v523, %v379
    %v540 = vmul.f32 %v524, %v380
    %v541 = vmul.f32 %v525, %v381
    %v542 = vmul.f32 %v526, %v382
    %v543 = vadd.f32 %v527, 0.041666646
    %v544 = vadd.f32 %v528, 0.041666646
    %v545 = vadd.f32 %v529, 0.041666646
    %v546 = vadd.f32 %v530, 0.041666646
    %v547 = vadd.f32 %v531, 0.041666646
    %v548 = vadd.f32 %v532, 0.041666646
    %v549 = vadd.f32 %v533, 0.041666646
    %v550 = vadd.f32 %v534, 0.041666646
    %v551 = vadd.f32 %v535, 0.041666646
    %v552 = vadd.f32 %v536, 0.041666646
    %v553 = vadd.f32 %v537, 0.041666646
    %v554 = vadd.f32 %v538, 0.041666646
    %v555 = vadd.f32 %v539, 0.041666646
    %v556 = vadd.f32 %v540, 0.041666646
    %v557 = vadd.f32 %v541, 0.041666646
    %v558 = vadd.f32 %v542, 0.041666646
    %v559 = vmul.f32 %v367, 0.5
    %v560 = vmul.f32 %v368, 0.5
    %v561 = vmul.f32 %v369, 0.5
    %v562 = vmul.f32 %v370, 0.5
    %v563 = vmul.f32 %v371, 0.5
    %v564 = vmul.f32 %v372, 0.5
    %v565 = vmul.f32 %v373, 0.5
    %v566 = vmul.f32 %v374, 0.5
    %v567 = vmul.f32 %v375, 0.5
    %v568 = vmul.f32 %v376, 0.5
    %v569 = vmul.f32 %v377, 0.5
    %v570 = vmul.f32 %v378, 0.5
    %v571 = vmul.f32 %v379, 0.5
    %v572 = vmul.f32 %v380, 0.5
    %v573 = vmul.f32 %v381, 0.5
    %v574 = vmul.f32 %v382, 0.5
    %v575 = vsub.f32 1.0, %v559
    %v576 = vsub.f32 1.0, %v560
    %v577 = vsub.f32 1.0, %v561
    %v578 = vsub.f32 1.0, %v562
    %v579 = vsub.f32 1.0, %v563
    %v580 = vsub.f32 1.0, %v564
    %v581 = vsub.f32 1.0, %v565
    %v582 = vsub.f32 1.0, %v566
    %v583 = vsub.f32 1.0, %v567
    %v584 = vsub.f32 1.0, %v568
    %v585 = vsub.f32 1.0, %v569
    %v586 = vsub.f32 1.0, %v570
    %v587 = vsub.f32 1.0, %v571
    %v588 = vsub.f32 1.0, %v572
    %v589 = vsub.f32 1.0, %v573
    %v590 = vsub.f32 1.0, %v574
    %v591 = vmul.f32 %v367, %v367
    %v592 = vmul.f32 %v368, %v368
    %v593 = vmul.f32 %v369, %v369
    %v594 = vmul.f32 %v370, %v370
    %v595 = vmul.f32 %v371, %v371
    %v596 = vmul.f32 %v372, %v372
    %v597 = vmul.f32 %v373, %v373
    %v598 = vmul.f32 %v374, %v374
    %v599 = vmul.f32 %v375, %v375
    %v600 = vmul.f32 %v376, %v376
    %v601 = vmul.f32 %v377, %v377
    %v602 = vmul.f32 %v378, %v378
    %v603 = vmul.f32 %v379, %v379
    %v604 = vmul.f32 %v380, %v380
    %v605 = vmul.f32 %v381, %v381
    %v606 = vmul.f32 %v382, %v382
    %v607 = vmul.f32 %v591, %v543
    %v608 = vmul.f32 %v592, %v544
    %v609 = vmul.f32 %v593, %v545
    %v610 = vmul.f32 %v594, %v546
    %v611 = vmul.f32 %v595, %v547
    %v612 = vmul.f32 %v596, %v548
    %v613 = vmul.f32 %v597, %v549
    %v614 = vmul.f32 %v598, %v550
    %v615 = vmul.f32 %v599, %v551
    %v616 = vmul.f32 %v600, %v552
    %v617 = vmul.f32 %v601, %v553
    %v618 = vmul.f32 %v602, %v554
    %v619 = vmul.f32 %v603, %v555
    %v620 = vmul.f32 %v604, %v556
    %v621 = vmul.f32 %v605, %v557
    %v622 = vmul.f32 %v606, %v558
    %v623 = vadd.f32 %v575, %v607
    %v624 = vadd.f32 %v576, %v608
    %v625 = vadd.f32 %v577, %v609
    %v626 = vadd.f32 %v578, %v610
    %v627 = vadd.f32 %v579, %v611
    %v628 = vadd.f32 %v580, %v612
    %v629 = vadd.f32 %v581, %v613
    %v630 = vadd.f32 %v582, %v614
    %v631 = vadd.f32 %v583, %v615
    %v632 = vadd.f32 %v584, %v616
    %v633 = vadd.f32 %v585, %v617
    %v634 = vadd.f32 %v586, %v618
    %v635 = vadd.f32 %v587, %v619
    %v636 = vadd.f32 %v588, %v620
    %v637 = vadd.f32 %v589, %v621
    %v638 = vadd.f32 %v590, %v622
    %v639 = vcvt.f32.s32.to.zero.pseudo %v255
    %v640 = vcvt.f32.s32.to.zero.pseudo %v256
    %v641 = vcvt.f32.s32.to.zero.pseudo %v257
    %v642 = vcvt.f32.s32.to.zero.pseudo %v258
    %v643 = vcvt.f32.s32.to.zero.pseudo %v259
    %v644 = vcvt.f32.s32.to.zero.pseudo %v260
    %v645 = vcvt.f32.s32.to.zero.pseudo %v261
    %v646 = vcvt.f32.s32.to.zero.pseudo %v262
    %v647 = vcvt.f32.s32.to.zero.pseudo %v263
    %v648 = vcvt.f32.s32.to.zero.pseudo %v264
    %v649 = vcvt.f32.s32.to.zero.pseudo %v265
    %v650 = vcvt.f32.s32.to.zero.pseudo %v266
    %v651 = vcvt.f32.s32.to.zero.pseudo %v267
    %v652 = vcvt.f32.s32.to.zero.pseudo %v268
    %v653 = vcvt.f32.s32.to.zero.pseudo %v269
    %v654 = vcvt.f32.s32.to.zero.pseudo %v270
    %v655 = vand.u32 %v639, 3
    %v656 = vand.u32 %v640, 3
    %v657 = vand.u32 %v641, 3
    %v658 = vand.u32 %v642, 3
    %v659 = vand.u32 %v643, 3
    %v660 = vand.u32 %v644, 3
    %v661 = vand.u32 %v645, 3
    %v662 = vand.u32 %v646, 3
    %v663 = vand.u32 %v647, 3
    %v664 = vand.u32 %v648, 3
    %v665 = vand.u32 %v649, 3
    %v666 = vand.u32 %v650, 3
    %v667 = vand.u32 %v651, 3
    %v668 = vand.u32 %v652, 3
    %v669 = vand.u32 %v653, 3
    %v670 = vand.u32 %v654, 3
    %v671 = vand.u32 %v655, 1
    %v672 = vand.u32 %v656, 1
    %v673 = vand.u32 %v657, 1
    %v674 = vand.u32 %v658, 1
    %v675 = vand.u32 %v659, 1
    %v676 = vand.u32 %v660, 1
    %v677 = vand.u32 %v661, 1
    %v678 = vand.u32 %v662, 1
    %v679 = vand.u32 %v663, 1
    %v680 = vand.u32 %v664, 1
    %v681 = vand.u32 %v665, 1
    %v682 = vand.u32 %v666, 1
    %v683 = vand.u32 %v667, 1
    %v684 = vand.u32 %v668, 1
    %v685 = vand.u32 %v669, 1
    %v686 = vand.u32 %v670, 1
    %vm687 = vcmp.eq.s32.totalorder %v671, 1
    %vm688 = vcmp.eq.s32.totalorder %v672, 1
    %vm689 = vcmp.eq.s32.totalorder %v673, 1
    %vm690 = vcmp.eq.s32.totalorder %v674, 1
    %vm691 = vcmp.eq.s32.totalorder %v675, 1
    %vm692 = vcmp.eq.s32.totalorder %v676, 1
    %vm693 = vcmp.eq.s32.totalorder %v677, 1
    %vm694 = vcmp.eq.s32.totalorder %v678, 1
    %vm695 = vcmp.eq.s32.totalorder %v679, 1
    %vm696 = vcmp.eq.s32.totalorder %v680, 1
    %vm697 = vcmp.eq.s32.totalorder %v681, 1
    %vm698 = vcmp.eq.s32.totalorder %v682, 1
    %vm699 = vcmp.eq.s32.totalorder %v683, 1
    %vm700 = vcmp.eq.s32.totalorder %v684, 1
    %vm701 = vcmp.eq.s32.totalorder %v685, 1
    %vm702 = vcmp.eq.s32.totalorder %v686, 1
    %v703 = vsel %vm687, %v623, %v479
    %v704 = vsel %vm688, %v624, %v480
    %v705 = vsel %vm689, %v625, %v481
    %v706 = vsel %vm690, %v626, %v482
    %v707 = vsel %vm691, %v627, %v483
    %v708 = vsel %vm692, %v628, %v484
    %v709 = vsel %vm693, %v629, %v485
    %v710 = vsel %vm694, %v630, %v486
    %v711 = vsel %vm695, %v631, %v487
    %v712 = vsel %vm696, %v632, %v488
    %v713 = vsel %vm697, %v633, %v489
    %v714 = vsel %vm698, %v634, %v490
    %v715 = vsel %vm699, %v635, %v491
    %v716 = vsel %vm700, %v636, %v492
    %v717 = vsel %vm701, %v637, %v493
    %v718 = vsel %vm702, %v638, %v494
    %v719 = vsel %vm687, %v479, %v623
    %v720 = vsel %vm688, %v480, %v624
    %v721 = vsel %vm689, %v481, %v625
    %v722 = vsel %vm690, %v482, %v626
    %v723 = vsel %vm691, %v483, %v627
    %v724 = vsel %vm692, %v484, %v628
    %v725 = vsel %vm693, %v485, %v629
    %v726 = vsel %vm694, %v486, %v630
    %v727 = vsel %vm695, %v487, %v631
    %v728 = vsel %vm696, %v488, %v632
    %v729 = vsel %vm697, %v489, %v633
    %v730 = vsel %vm698, %v490, %v634
    %v731 = vsel %vm699, %v491, %v635
    %v732 = vsel %vm700, %v492, %v636
    %v733 = vsel %vm701, %v493, %v637
    %v734 = vsel %vm702, %v494, %v638
    %vm735 = vcmp.ge.s32.totalorder %v655, 2
    %vm736 = vcmp.ge.s32.totalorder %v656, 2
    %vm737 = vcmp.ge.s32.totalorder %v657, 2
    %vm738 = vcmp.ge.s32.totalorder %v658, 2
    %vm739 = vcmp.ge.s32.totalorder %v659, 2
    %vm740 = vcmp.ge.s32.totalorder %v660, 2
    %vm741 = vcmp.ge.s32.totalorder %v661, 2
    %vm742 = vcmp.ge.s32.totalorder %v662, 2
    %vm743 = vcmp.ge.s32.totalorder %v663, 2
    %vm744 = vcmp.ge.s32.totalorder %v664, 2
    %vm745 = vcmp.ge.s32.totalorder %v665, 2
    %vm746 = vcmp.ge.s32.totalorder %v666, 2
    %vm747 = vcmp.ge.s32.totalorder %v667, 2
    %vm748 = vcmp.ge.s32.totalorder %v668, 2
    %vm749 = vcmp.ge.s32.totalorder %v669, 2
    %vm750 = vcmp.ge.s32.totalorder %v670, 2
    %v751 = vsub.f32 0.0, %v703
    %v752 = vsub.f32 0.0, %v704
    %v753 = vsub.f32 0.0, %v705
    %v754 = vsub.f32 0.0, %v706
    %v755 = vsub.f32 0.0, %v707
    %v756 = vsub.f32 0.0, %v708
    %v757 = vsub.f32 0.0, %v709
    %v758 = vsub.f32 0.0, %v710
    %v759 = vsub.f32 0.0, %v711
    %v760 = vsub.f32 0.0, %v712
    %v761 = vsub.f32 0.0, %v713
    %v762 = vsub.f32 0.0, %v714
    %v763 = vsub.f32 0.0, %v715
    %v764 = vsub.f32 0.0, %v716
    %v765 = vsub.f32 0.0, %v717
    %v766 = vsub.f32 0.0, %v718
    %v767 = vsel %vm735, %v751, %v703
    %v768 = vsel %vm736, %v752, %v704
    %v769 = vsel %vm737, %v753, %v705
    %v770 = vsel %vm738, %v754, %v706
    %v771 = vsel %vm739, %v755, %v707
    %v772 = vsel %vm740, %v756, %v708
    %v773 = vsel %vm741, %v757, %v709
    %v774 = vsel %vm742, %v758, %v710
    %v775 = vsel %vm743, %v759, %v711
    %v776 = vsel %vm744, %v760, %v712
    %v777 = vsel %vm745, %v761, %v713
    %v778 = vsel %vm746, %v762, %v714
    %v779 = vsel %vm747, %v763, %v715
    %v780 = vsel %vm748, %v764, %v716
    %v781 = vsel %vm749, %v765, %v717
    %v782 = vsel %vm750, %v766, %v718
    %vm783 = vcmp.eq.s32.totalorder %v655, 1
    %vm784 = vcmp.eq.s32.totalorder %v656, 1
    %vm785 = vcmp.eq.s32.totalorder %v657, 1
    %vm786 = vcmp.eq.s32.totalorder %v658, 1
    %vm787 = vcmp.eq.s32.totalorder %v659, 1
    %vm788 = vcmp.eq.s32.totalorder %v660, 1
    %vm789 = vcmp.eq.s32.totalorder %v661, 1
    %vm790 = vcmp.eq.s32.totalorder %v662, 1
    %vm791 = vcmp.eq.s32.totalorder %v663, 1
    %vm792 = vcmp.eq.s32.totalorder %v664, 1
    %vm793 = vcmp.eq.s32.totalorder %v665, 1
    %vm794 = vcmp.eq.s32.totalorder %v666, 1
    %vm795 = vcmp.eq.s32.totalorder %v667, 1
    %vm796 = vcmp.eq.s32.totalorder %v668, 1
    %vm797 = vcmp.eq.s32.totalorder %v669, 1
    %vm798 = vcmp.eq.s32.totalorder %v670, 1
    %vm799 = vcmp.eq.s32.totalorder %v655, 2
    %vm800 = vcmp.eq.s32.totalorder %v656, 2
    %vm801 = vcmp.eq.s32.totalorder %v657, 2
    %vm802 = vcmp.eq.s32.totalorder %v658, 2
    %vm803 = vcmp.eq.s32.totalorder %v659, 2
    %vm804 = vcmp.eq.s32.totalorder %v660, 2
    %vm805 = vcmp.eq.s32.totalorder %v661, 2
    %vm806 = vcmp.eq.s32.totalorder %v662, 2
    %vm807 = vcmp.eq.s32.totalorder %v663, 2
    %vm808 = vcmp.eq.s32.totalorder %v664, 2
    %vm809 = vcmp.eq.s32.totalorder %v665, 2
    %vm810 = vcmp.eq.s32.totalorder %v666, 2
    %vm811 = vcmp.eq.s32.totalorder %v667, 2
    %vm812 = vcmp.eq.s32.totalorder %v668, 2
    %vm813 = vcmp.eq.s32.totalorder %v669, 2
    %vm814 = vcmp.eq.s32.totalorder %v670, 2
    %vm815 = vmor %vm783, %vm799
    %vm816 = vmor %vm784, %vm800
    %vm817 = vmor %vm785, %vm801
    %vm818 = vmor %vm786, %vm802
    %vm819 = vmor %vm787, %vm803
    %vm820 = vmor %vm788, %vm804
    %vm821 = vmor %vm789, %vm805
    %vm822 = vmor %vm790, %vm806
    %vm823 = vmor %vm791, %vm807
    %vm824 = vmor %vm792, %vm808
    %vm825 = vmor %vm793, %vm809
    %vm826 = vmor %vm794, %vm810
    %vm827 = vmor %vm795, %vm811
    %vm828 = vmor %vm796, %vm812
    %vm829 = vmor %vm797, %vm813
    %vm830 = vmor %vm798, %vm814
    %v831 = vsub.f32 0.0, %v719
    %v832 = vsub.f32 0.0, %v720
    %v833 = vsub.f32 0.0, %v721
    %v834 = vsub.f32 0.0, %v722
    %v835 = vsub.f32 0.0, %v723
    %v836 = vsub.f32 0.0, %v724
    %v837 = vsub.f32 0.0, %v725
    %v838 = vsub.f32 0.0, %v726
    %v839 = vsub.f32 0.0, %v727
    %v840 = vsub.f32 0.0, %v728
    %v841 = vsub.f32 0.0, %v729
    %v842 = vsub.f32 0.0, %v730
    %v843 = vsub.f32 0.0, %v731
    %v844 = vsub.f32 0.0, %v732
    %v845 = vsub.f32 0.0, %v733
    %v846 = vsub.f32 0.0, %v734
    %v847 = vsel %vm815, %v831, %v719
    %v848 = vsel %vm816, %v832, %v720
    %v849 = vsel %vm817, %v833, %v721
    %v850 = vsel %vm818, %v834, %v722
    %v851 = vsel %vm819, %v835, %v723
    %v852 = vsel %vm820, %v836, %v724
    %v853 = vsel %vm821, %v837, %v725
    %v854 = vsel %vm822, %v838, %v726
    %v855 = vsel %vm823, %v839, %v727
    %v856 = vsel %vm824, %v840, %v728
    %v857 = vsel %vm825, %v841, %v729
    %v858 = vsel %vm826, %v842, %v730
    %v859 = vsel %vm827, %v843, %v731
    %v860 = vsel %vm828, %v844, %v732
    %v861 = vsel %vm829, %v845, %v733
    %v862 = vsel %vm830, %v846, %v734
    %863 = vst [vmem:[#allocation2] sm:$0xff] %v847
    %864 = vst [vmem:[#allocation2 + $0x10] sm:$0xff] %v848
    %865 = vst [vmem:[#allocation2 + $0x20] sm:$0xff] %v849
    %866 = vst [vmem:[#allocation2 + $0x30] sm:$0xff] %v850
    %867 = vst [vmem:[#allocation2 + $0x40] sm:$0xff] %v851
    %868 = vst [vmem:[#allocation2 + $0x50] sm:$0xff] %v852
    %869 = vst [vmem:[#allocation2 + $0x60] sm:$0xff] %v853
    %870 = vst [vmem:[#allocation2 + $0x70] sm:$0xff] %v854
    %871 = vst [vmem:[#allocation2 + $0x80] sm:$0xff] %v855
    %872 = vst [vmem:[#allocation2 + $0x90] sm:$0xff] %v856
    %873 = vst [vmem:[#allocation2 + $0xa0] sm:$0xff] %v857
    %874 = vst [vmem:[#allocation2 + $0xb0] sm:$0xff] %v858
    %875 = vst [vmem:[#allocation2 + $0xc0] sm:$0xff] %v859
    %876 = vst [vmem:[#allocation2 + $0xd0] sm:$0xff] %v860
    %877 = vst [vmem:[#allocation2 + $0xe0] sm:$0xff] %v861
    %878 = vst [vmem:[#allocation2 + $0xf0] sm:$0xff] %v862
    %879 = vst [vmem:[#allocation2 + $0x8] sm:$0xff] %v767
    %880 = vst [vmem:[#allocation2 + $0x18] sm:$0xff] %v768
    %881 = vst [vmem:[#allocation2 + $0x28] sm:$0xff] %v769
    %882 = vst [vmem:[#allocation2 + $0x38] sm:$0xff] %v770
    %883 = vst [vmem:[#allocation2 + $0x48] sm:$0xff] %v771
    %884 = vst [vmem:[#allocation2 + $0x58] sm:$0xff] %v772
    %885 = vst [vmem:[#allocation2 + $0x68] sm:$0xff] %v773
    %886 = vst [vmem:[#allocation2 + $0x78] sm:$0xff] %v774
    %887 = vst [vmem:[#allocation2 + $0x88] sm:$0xff] %v775
    %888 = vst [vmem:[#allocation2 + $0x98] sm:$0xff] %v776
    %889 = vst [vmem:[#allocation2 + $0xa8] sm:$0xff] %v777
    %890 = vst [vmem:[#allocation2 + $0xb8] sm:$0xff] %v778
    %891 = vst [vmem:[#allocation2 + $0xc8] sm:$0xff] %v779
    %892 = vst [vmem:[#allocation2 + $0xd8] sm:$0xff] %v780
    %893 = vst [vmem:[#allocation2 + $0xe8] sm:$0xff] %v781
    %894 = vst [vmem:[#allocation2 + $0xf8] sm:$0xff] %v782
    // Predicated region
    $region10: #{tpu_custom_call.1} parent=1 // pred_check
      _
    $region11: #{tpu_custom_call.1} parent=1 // pred_check_branch
      %896 = sbr.rel (0) target = $region13
    $region12: #{tpu_custom_call.1} parent=1 // pred_region
      %898 = vsyncadd [#allocation3], 0
      %s899 = sshll.u32 [#allocation2], 4
      %s900 = int_to_ptr.vmem [resolvable:$true] %s899
      %s901 = sshll.u32 %s2, 4
      %s902 = int_to_ptr.hbm [resolvable:$true] %s901
      %907 = dma.vmem_to_hbm [thread:$0]  %s900, 4096, %s902, [#allocation3], 256, 256, 16
    $region13: #{tpu_custom_call.1} parent=1 // pred_fallthru
      _
    // Predicated region
    $region14: #{tpu_custom_call.1} parent=1 // pred_check
      _
    $region15: #{tpu_custom_call.1} parent=1 // pred_check_branch
      %909 = sbr.rel (0) target = $region17
    $region16: #{tpu_custom_call.1} parent=1 // pred_region
      %911 = dma.done [#allocation3], 4096
    $region17: #{tpu_custom_call.1} parent=1 // pred_fallthru
      _
    %912 = vsyncpa [#allocation3], 1

</llo_original>
